<compile_context>
chip_gen: v5e
topology: v5e:2x2
jax: 0.10.0
libtpu: 0.0.40
codegen_flags: <defaults>
</compile_context>

<pallas_src>
import functools

import jax
import jax.numpy as jnp
from jax.experimental import pallas as pl
from jax.experimental.pallas import tpu as pltpu


def se_tv_kernel(w1_ref, b1_ref, w2_ref, b2_ref, mask_ref, x_ref, out_ref, *, H, W):
    """One tile of NB whole batch elements (TM = NB*C rows) per grid step.

    w1_ref  : (NB*R, NB*C)  block-diagonal fc1 weight (kron(I, W1))    VMEM
    b1_ref  : (NB*R, 1)     tiled fc1 bias                              VMEM
    w2_ref  : (NB*C, NB*R)  block-diagonal fc2 weight (kron(I, W2))    VMEM
    b2_ref  : (NB*C, 1)     tiled fc2 bias                              VMEM
    mask_ref: (1, HW)       crop mask * 1/((H-1)*(W-1))                 VMEM
    x_ref   : (TM, HW)      lane-dense input rows (native dtype)        VMEM
    out_ref : (TM, HW)      lane-dense output rows (native dtype)       VMEM
    """
    HW = H * W
    x = x_ref[...].astype(jnp.float32)                      # (TM, HW) f32 compute copy

    # --- total variation: neighbour taps via XLU lane rotation -------------
    # roll(shift=HW-1)[i] == x[i+1] (right neighbour); roll(shift=HW-W)[i] == x[i+W] (below).
    x_right = pltpu.roll(x, shift=HW - 1, axis=1)
    x_down = pltpu.roll(x, shift=HW - W, axis=1)
    dg = x - x_right
    dh = x - x_down
    # mask zeroes wrapped / out-of-crop lanes and already carries the 1/((H-1)(W-1)) factor,
    # so the lane reduction directly yields the AdaptiveAvgPool2d(1) mean per row.
    tv = (dg * dg + dh * dh) * mask_ref[...]
    tv_mean = jnp.sum(tv, axis=1, keepdims=True)             # (TM, 1) = per-(n,c) TV mean

    # --- SE MLP, batched over all batch elements in the tile ---------------
    h1 = jnp.dot(w1_ref[...], tv_mean, preferred_element_type=jnp.float32) + b1_ref[...]
    h1 = jnp.maximum(h1, 0.0)                                 # (NB*R, 1)
    s = jnp.dot(w2_ref[...], h1, preferred_element_type=jnp.float32) + b2_ref[...]
    scale = jax.nn.sigmoid(s)                                 # (TM, 1)

    # --- gate the input; lane-dense store in the input dtype ----------------
    out_ref[...] = (x * scale).astype(out_ref.dtype)


def se_tv_layer(x, w1, b1, w2, b2, *, tile_budget_bytes=4 * 1024 * 1024):
    """x: (N, C, H, W).  w1: (R, C), b1: (R,), w2: (C, R), b2: (C,).  Returns x.dtype."""
    N, C, H, W = x.shape
    R = w1.shape[0]
    HW = H * W

    # Flatten batch into the row dimension: (N*C, HW), lane-dense last dim.
    xf = x.reshape(N * C, HW)

    # Choose NB = batch elements per tile: must divide N; NB*C rows must be a multiple of
    # 8 sublanes (or cover the full array); keep the x tile within the budget so the
    # in+out double buffers fit comfortably in VMEM (v7x has 64 MiB per TensorCore).
    bytes_per_batch = C * HW * x.dtype.itemsize
    NB = None
    for cand in range(N, 0, -1):
        if N % cand:
            continue
        rows = cand * C
        fits = cand * bytes_per_batch <= tile_budget_bytes
        aligned = (rows % 8 == 0) or (cand == N)
        if fits and aligned:
            NB = cand
            break
    if NB is None:
        NB = N                      # full-array block is always a legal block shape
    TM = NB * C
    num_tiles = N // NB

    # Crop mask (depends only on lane position) with the mean normalisation folded in.
    lane = jnp.arange(HW, dtype=jnp.int32)
    col = lane % W
    row = lane // W
    valid = (col < (W - 1)) & (row < (H - 1))
    inv_area = 1.0 / float((H - 1) * (W - 1))
    mask = jnp.where(valid, inv_area, 0.0).astype(jnp.float32).reshape(1, HW)

    # Block-diagonal SE weights: one MLP evaluation covers all NB batch elements in a tile.
    eye = jnp.eye(NB, dtype=jnp.float32)
    w1_big = jnp.kron(eye, w1.astype(jnp.float32))            # (NB*R, NB*C)
    w2_big = jnp.kron(eye, w2.astype(jnp.float32))            # (NB*C, NB*R)
    b1_big = jnp.tile(b1.astype(jnp.float32), NB).reshape(NB * R, 1)
    b2_big = jnp.tile(b2.astype(jnp.float32), NB).reshape(NB * C, 1)

    kernel = functools.partial(se_tv_kernel, H=H, W=W)

    grid_spec = pltpu.PrefetchScalarGridSpec(
        num_scalar_prefetch=0,
        grid=(num_tiles,),
        in_specs=[
            pl.BlockSpec((NB * R, NB * C), lambda t: (0, 0)),   # fc1 weight (block-diag)
            pl.BlockSpec((NB * R, 1), lambda t: (0, 0)),        # fc1 bias
            pl.BlockSpec((NB * C, NB * R), lambda t: (0, 0)),   # fc2 weight (block-diag)
            pl.BlockSpec((NB * C, 1), lambda t: (0, 0)),        # fc2 bias
            pl.BlockSpec((1, HW), lambda t: (0, 0)),            # crop / normalisation mask
            pl.BlockSpec((TM, HW), lambda t: (t, 0)),           # x rows (lane-dense)
        ],
        out_specs=pl.BlockSpec((TM, HW), lambda t: (t, 0)),
    )

    out = pl.pallas_call(
        kernel,
        out_shape=jax.ShapeDtypeStruct((N * C, HW), x.dtype),
        grid_spec=grid_spec,
        compiler_params=pltpu.CompilerParams(dimension_semantics=("parallel",)),
    )(w1_big, b1_big, w2_big, b2_big, mask, xf)

    return out.reshape(N, C, H, W)


def reference_forward(x, w1, b1, w2, b2):
    """Pure-JAX reference mirroring the PyTorch SE_TVLayer.forward."""
    f = x[:, :, :-1, :-1]
    g = x[:, :, :-1, 1:]
    h = x[:, :, 1:, :-1]
    tv = (f - g) ** 2.0 + (f - h) ** 2.0
    y = tv.mean(axis=(2, 3))                                   # (N, C)
    y = jnp.maximum(y @ w1.T + b1, 0.0)                        # (N, R)
    y = jax.nn.sigmoid(y @ w2.T + b2)                          # (N, C)
    return x * y[:, :, None, None]


if __name__ == "__main__":
    N, C, H, W = 2, 4, 16, 16
    R = 64                                                     # reduction (module default)

    key = jax.random.PRNGKey(0)
    kx, k1, kb1, k2, kb2 = jax.random.split(key, 5)
    x = jax.random.normal(kx, (N, C, H, W), jnp.float32)
    w1 = jax.random.normal(k1, (R, C), jnp.float32) * 0.2       # nn.Linear(channel, reduction)
    b1 = jax.random.normal(kb1, (R,), jnp.float32) * 0.1
    w2 = jax.random.normal(k2, (C, R), jnp.float32) * 0.2       # nn.Linear(reduction, channel)
    b2 = jax.random.normal(kb2, (C,), jnp.float32) * 0.1

    out = se_tv_layer(x, w1, b1, w2, b2)
    out = jax.block_until_ready(out)

    ref = reference_forward(x, w1, b1, w2, b2)
    assert out.shape == (N, C, H, W)
    assert out.dtype == x.dtype
    assert jnp.allclose(out, ref, atol=1e-4, rtol=1e-4), float(jnp.max(jnp.abs(out - ref)))

    print("KERNEL_OK")
</pallas_src>

<mosaic_0001>
module attributes {stable_mosaic.version = 11 : i64} {
  func.func @se_tv_kernel(%arg0: i32, %arg1: memref<128x8xf32, #tpu.memory_space<vmem>>, %arg2: memref<128x1xf32, #tpu.memory_space<vmem>>, %arg3: memref<8x128xf32, #tpu.memory_space<vmem>>, %arg4: memref<8x1xf32, #tpu.memory_space<vmem>>, %arg5: memref<1x256xf32, #tpu.memory_space<vmem>>, %arg6: memref<8x256xf32, #tpu.memory_space<vmem>>, %arg7: memref<8x256xf32, #tpu.memory_space<vmem>>) attributes {dimension_semantics = [#tpu.dimension_semantics<parallel>], iteration_bounds = array<i64: 1>, scalar_prefetch = 0 : i64, scratch_operands = 0 : i64, tpu.core_type = #tpu.core_type<tc>, window_params = [{pipeline_mode = #tpu.pipeline_mode<synchronous>, transform_indices = @transform_0, window_bounds = array<i64: 128, 8>}, {pipeline_mode = #tpu.pipeline_mode<synchronous>, transform_indices = @transform_1, window_bounds = array<i64: 128, 1>}, {pipeline_mode = #tpu.pipeline_mode<synchronous>, transform_indices = @transform_2, window_bounds = array<i64: 8, 128>}, {pipeline_mode = #tpu.pipeline_mode<synchronous>, transform_indices = @transform_3, window_bounds = array<i64: 8, 1>}, {pipeline_mode = #tpu.pipeline_mode<synchronous>, transform_indices = @transform_4, window_bounds = array<i64: 1, 256>}, {transform_indices = @transform_5, window_bounds = array<i64: 8, 256>}, {transform_indices = @transform_6, window_bounds = array<i64: 8, 256>}]} {
    %c0 = arith.constant 0 : index
    %c0_0 = arith.constant 0 : index
    %0 = vector.load %arg6[%c0, %c0_0] : memref<8x256xf32, #tpu.memory_space<vmem>>, vector<8x256xf32>
    %c255_i32 = arith.constant 255 : i32
    %1 = tpu.dynamic_rotate %0 by %c255_i32 dim 1 : vector<8x256xf32>, i32 -> vector<8x256xf32>
    %c240_i32 = arith.constant 240 : i32
    %2 = tpu.dynamic_rotate %0 by %c240_i32 dim 1 : vector<8x256xf32>, i32 -> vector<8x256xf32>
    %3 = arith.subf %0, %1 : vector<8x256xf32>
    %4 = arith.subf %0, %2 : vector<8x256xf32>
    %5 = arith.mulf %3, %3 : vector<8x256xf32>
    %6 = arith.mulf %4, %4 : vector<8x256xf32>
    %7 = arith.addf %5, %6 : vector<8x256xf32>
    %c0_1 = arith.constant 0 : index
    %c0_2 = arith.constant 0 : index
    %8 = vector.load %arg5[%c0_1, %c0_2] : memref<1x256xf32, #tpu.memory_space<vmem>>, vector<1x256xf32>
    %9 = vector.broadcast %8 : vector<1x256xf32> to vector<8x256xf32>
    %10 = arith.mulf %7, %9 : vector<8x256xf32>
    %cst = arith.constant dense<0.000000e+00> : vector<8xf32>
    %11 = vector.multi_reduction <add>, %10, %cst [1] : vector<8x256xf32> to vector<8xf32>
    %12 = vector.shape_cast %11 : vector<8xf32> to vector<8x1xf32>
    %c0_3 = arith.constant 0 : index
    %c0_4 = arith.constant 0 : index
    %13 = vector.load %arg1[%c0_3, %c0_4] : memref<128x8xf32, #tpu.memory_space<vmem>>, vector<128x8xf32>
    %cst_5 = arith.constant dense<0.000000e+00> : vector<128x1xf32>
    %14 = tpu.matmul %13, %12, %cst_5 {dimension_numbers = #tpu.dot_dimension_numbers<[1], [0], [0], [1], [0, 0, 1, 1], [], []>} : vector<128x8xf32>, vector<8x1xf32>, vector<128x1xf32> -> vector<128x1xf32>
    %c0_6 = arith.constant 0 : index
    %c0_7 = arith.constant 0 : index
    %15 = vector.load %arg2[%c0_6, %c0_7] : memref<128x1xf32, #tpu.memory_space<vmem>>, vector<128x1xf32>
    %16 = arith.addf %14, %15 : vector<128x1xf32>
    %cst_8 = arith.constant 0.000000e+00 : f32
    %17 = vector.broadcast %cst_8 : f32 to vector<128x1xf32>
    %18 = arith.maximumf %16, %17 : vector<128x1xf32>
    %c0_9 = arith.constant 0 : index
    %c0_10 = arith.constant 0 : index
    %19 = vector.load %arg3[%c0_9, %c0_10] : memref<8x128xf32, #tpu.memory_space<vmem>>, vector<8x128xf32>
    %cst_11 = arith.constant dense<0.000000e+00> : vector<8x1xf32>
    %20 = tpu.matmul %19, %18, %cst_11 {dimension_numbers = #tpu.dot_dimension_numbers<[1], [0], [0], [1], [0, 0, 1, 1], [], []>} : vector<8x128xf32>, vector<128x1xf32>, vector<8x1xf32> -> vector<8x1xf32>
    %c0_12 = arith.constant 0 : index
    %c0_13 = arith.constant 0 : index
    %21 = vector.load %arg4[%c0_12, %c0_13] : memref<8x1xf32, #tpu.memory_space<vmem>>, vector<8x1xf32>
    %22 = arith.addf %20, %21 : vector<8x1xf32>
    %23 = arith.negf %22 : vector<8x1xf32>
    %24 = math.exp %23 : vector<8x1xf32>
    %cst_14 = arith.constant 1.000000e+00 : f32
    %25 = vector.broadcast %cst_14 : f32 to vector<8x1xf32>
    %26 = arith.addf %25, %24 : vector<8x1xf32>
    %27 = arith.divf %25, %26 : vector<8x1xf32>
    %28 = vector.broadcast %27 : vector<8x1xf32> to vector<8x256xf32>
    %29 = arith.mulf %0, %28 : vector<8x256xf32>
    %c0_15 = arith.constant 0 : index
    %c0_16 = arith.constant 0 : index
    %30 = vector.load %arg7[%c0_15, %c0_16] : memref<8x256xf32, #tpu.memory_space<vmem>>, vector<8x256xf32>
    tpu.vector_store %arg7[%c0_15, %c0_16], %29 {strides = array<i32>} : memref<8x256xf32, #tpu.memory_space<vmem>>, vector<8x256xf32>,
    return
  }
  func.func @transform_0(%arg0: i32) -> (i32, i32) {
    %c0_i32 = arith.constant 0 : i32
    %c0_i32_0 = arith.constant 0 : i32
    %c0_i32_1 = arith.constant 0 : i32
    return %c0_i32, %c0_i32_0 : i32, i32
  }
  func.func @transform_1(%arg0: i32) -> (i32, i32) {
    %c0_i32 = arith.constant 0 : i32
    %c0_i32_0 = arith.constant 0 : i32
    %c0_i32_1 = arith.constant 0 : i32
    return %c0_i32, %c0_i32_0 : i32, i32
  }
  func.func @transform_2(%arg0: i32) -> (i32, i32) {
    %c0_i32 = arith.constant 0 : i32
    %c0_i32_0 = arith.constant 0 : i32
    %c0_i32_1 = arith.constant 0 : i32
    return %c0_i32, %c0_i32_0 : i32, i32
  }
  func.func @transform_3(%arg0: i32) -> (i32, i32) {
    %c0_i32 = arith.constant 0 : i32
    %c0_i32_0 = arith.constant 0 : i32
    %c0_i32_1 = arith.constant 0 : i32
    return %c0_i32, %c0_i32_0 : i32, i32
  }
  func.func @transform_4(%arg0: i32) -> (i32, i32) {
    %c0_i32 = arith.constant 0 : i32
    %c0_i32_0 = arith.constant 0 : i32
    %c0_i32_1 = arith.constant 0 : i32
    return %c0_i32, %c0_i32_0 : i32, i32
  }
  func.func @transform_5(%arg0: i32) -> (i32, i32) {
    %c0_i32 = arith.constant 0 : i32
    %c0_i32_0 = arith.constant 0 : i32
    return %arg0, %c0_i32 : i32, i32
  }
  func.func @transform_6(%arg0: i32) -> (i32, i32) {
    %c0_i32 = arith.constant 0 : i32
    %c0_i32_0 = arith.constant 0 : i32
    return %arg0, %c0_i32 : i32, i32
  }
}

</mosaic_0001>

<llo_original>
// kernel: tpu_custom_call.1
$region0: #{tpu_custom_call.1}
  #allocation0 [shape = 'u32[]', space=smem, size = 0x4, offset = 0x4, fixed_abs, tag = 'smem constant byte address 0x4 - core index']
  #allocation1 [shape = 'u32[72,128]{1,0:T(1,128)}', space=vmem, size = 0x9000, scoped, tag = 'internal scratch']
  %s0 = inlined_call_operand.vmem [shape: f32[128,8], index: 0, kind: input, shape index: {}]
  %s1 = inlined_call_operand.vmem [shape: f32[128,1], index: 1, kind: input, shape index: {}]
  %s2 = inlined_call_operand.vmem [shape: f32[8,128], index: 2, kind: input, shape index: {}]
  %s3 = inlined_call_operand.vmem [shape: f32[8,1], index: 3, kind: input, shape index: {}]
  %s4 = inlined_call_operand.vmem [shape: f32[1,256], index: 4, kind: input, shape index: {}]
  %s5 = inlined_call_operand.vmem [shape: f32[8,256], index: 5, kind: input, shape index: {}]
  %s6 = inlined_call_operand.hbm [shape: f32[8,256], index: 6, kind: output, shape index: {}]
  %s7 = sld [smem:[#allocation0]]
  $region34: #{tpu_custom_call.1} parent=0
    _
  %s9 = ssub.s32 1, %s7
  %s10 = scalar_select 0, %s9, %s7
  $region1: #{tpu_custom_call.1} parent=0
    #allocation2 [shape = 'u8[8192]{0}', space=vmem, size = 0x2000, scoped, tag = 'output window, operand 0, single buffered']
    #allocation3 [shape = 's32[1]{0}', space=sflag, size = 0x4, scoped, tag = 'scoped memory for tpu_custom_call.1']
    %11 = vsyncpa [#allocation3], 0
    // Predicated region
    $region2: #{tpu_custom_call.1} parent=1 // pred_check
      _
    $region3: #{tpu_custom_call.1} parent=1 // pred_check_branch
      %13 = sbr.rel (0) target = $region5
    $region4: #{tpu_custom_call.1} parent=1 // pred_region
      _
    $region5: #{tpu_custom_call.1} parent=1 // pred_fallthru
      _
    // Predicated region
    $region6: #{tpu_custom_call.1} parent=1 // pred_check
      _
    $region7: #{tpu_custom_call.1} parent=1 // pred_check_branch
      %15 = sbr.rel (0) target = $region9
    $region8: #{tpu_custom_call.1} parent=1 // pred_region
      _
    $region9: #{tpu_custom_call.1} parent=1 // pred_fallthru
      _
    // Predicated region
    $region10: #{tpu_custom_call.1} parent=1 // pred_check
      _
    $region11: #{tpu_custom_call.1} parent=1 // pred_check_branch
      %17 = sbr.rel (0) target = $region13
    $region12: #{tpu_custom_call.1} parent=1 // pred_region
      _
    $region13: #{tpu_custom_call.1} parent=1 // pred_fallthru
      _
    // Predicated region
    $region14: #{tpu_custom_call.1} parent=1 // pred_check
      _
    $region15: #{tpu_custom_call.1} parent=1 // pred_check_branch
      %19 = sbr.rel (0) target = $region17
    $region16: #{tpu_custom_call.1} parent=1 // pred_region
      _
    $region17: #{tpu_custom_call.1} parent=1 // pred_fallthru
      _
    // Predicated region
    $region18: #{tpu_custom_call.1} parent=1 // pred_check
      _
    $region19: #{tpu_custom_call.1} parent=1 // pred_check_branch
      %21 = sbr.rel (0) target = $region21
    $region20: #{tpu_custom_call.1} parent=1 // pred_region
      _
    $region21: #{tpu_custom_call.1} parent=1 // pred_fallthru
      _
    // Predicated region
    $region22: #{tpu_custom_call.1} parent=1 // pred_check
      _
    $region23: #{tpu_custom_call.1} parent=1 // pred_check_branch
      %23 = sbr.rel (0) target = $region25
    $region24: #{tpu_custom_call.1} parent=1 // pred_region
      _
    $region25: #{tpu_custom_call.1} parent=1 // pred_fallthru
      _
    %v24 = vld [vmem:[%s5] sm:$0xff]
    %v25 = vld [vmem:[%s5 + $0x8] sm:$0xff]
    %26 = vrot.lane.b32.xlu0 %v24, 127
    %v27 = vpop.permute.xlu0 %26
    %28 = vrot.lane.b32.xlu0 %v25, 127
    %v29 = vpop.permute.xlu0 %28
    %v30 = vlaneseq
    %v31 = vand.u32 %v30, 127
    %vm32 = vcmp.lt.s32.totalorder %v31, 127
    %v33 = vsel %vm32, %v27, %v29
    %v34 = vsel %vm32, %v29, %v27
    %35 = vrot.lane.b32.xlu0 %v24, 112
    %v36 = vpop.permute.xlu0 %35
    %37 = vrot.lane.b32.xlu0 %v25, 112
    %v38 = vpop.permute.xlu0 %37
    %vm39 = vcmp.lt.s32.totalorder %v31, 112
    %v40 = vsel %vm39, %v36, %v38
    %v41 = vsel %vm39, %v38, %v36
    %v42 = vsub.f32 %v24, %v33
    %v43 = vsub.f32 %v25, %v34
    %v44 = vsub.f32 %v24, %v40
    %v45 = vsub.f32 %v25, %v41
    %v46 = vmul.f32 %v42, %v42
    %v47 = vmul.f32 %v43, %v43
    %v48 = vmul.f32 %v44, %v44
    %v49 = vmul.f32 %v45, %v45
    %v50 = vadd.f32 %v46, %v48
    %v51 = vadd.f32 %v47, %v49
    %v52 = vld [vmem:[%s4] sm:$0x3]
    %v54 = vperm.slane %v52, 0
    %v55 = vperm.slane %v52, 1
    %v58 = vmul.f32 %v50, %v54
    %v59 = vmul.f32 %v51, %v55
    %v60 = vadd.f32 %v58, %v59
    %61 = vadd.xlane.f32.xlu0 %v60
    %v62 = vpop.xlane.xlu0 %61
    %v63 = vld [vmem:[%s0] sm:$0xff]
    %v64 = vld [vmem:[%s0 + $0x8] sm:$0xff]
    %v65 = vld [vmem:[%s0 + $0x10] sm:$0xff]
    %v66 = vld [vmem:[%s0 + $0x18] sm:$0xff]
    %v67 = vld [vmem:[%s0 + $0x20] sm:$0xff]
    %v68 = vld [vmem:[%s0 + $0x28] sm:$0xff]
    %v69 = vld [vmem:[%s0 + $0x30] sm:$0xff]
    %v70 = vld [vmem:[%s0 + $0x38] sm:$0xff]
    %v71 = vld [vmem:[%s0 + $0x40] sm:$0xff]
    %v72 = vld [vmem:[%s0 + $0x48] sm:$0xff]
    %v73 = vld [vmem:[%s0 + $0x50] sm:$0xff]
    %v74 = vld [vmem:[%s0 + $0x58] sm:$0xff]
    %v75 = vld [vmem:[%s0 + $0x60] sm:$0xff]
    %v76 = vld [vmem:[%s0 + $0x68] sm:$0xff]
    %v77 = vld [vmem:[%s0 + $0x70] sm:$0xff]
    %v78 = vld [vmem:[%s0 + $0x78] sm:$0xff]
    %v79 = vld [vmem:[%s1] sm:$0xff]
    %v80 = vld [vmem:[%s1 + $0x8] sm:$0xff]
    %v81 = vld [vmem:[%s1 + $0x10] sm:$0xff]
    %v82 = vld [vmem:[%s1 + $0x18] sm:$0xff]
    %v83 = vld [vmem:[%s1 + $0x20] sm:$0xff]
    %v84 = vld [vmem:[%s1 + $0x28] sm:$0xff]
    %v85 = vld [vmem:[%s1 + $0x30] sm:$0xff]
    %v86 = vld [vmem:[%s1 + $0x38] sm:$0xff]
    %v87 = vld [vmem:[%s1 + $0x40] sm:$0xff]
    %v88 = vld [vmem:[%s1 + $0x48] sm:$0xff]
    %v89 = vld [vmem:[%s1 + $0x50] sm:$0xff]
    %v90 = vld [vmem:[%s1 + $0x58] sm:$0xff]
    %v91 = vld [vmem:[%s1 + $0x60] sm:$0xff]
    %v92 = vld [vmem:[%s1 + $0x68] sm:$0xff]
    %v93 = vld [vmem:[%s1 + $0x70] sm:$0xff]
    %v94 = vld [vmem:[%s1 + $0x78] sm:$0xff]
    %vm95 = vcmask 64512
    %v97 = vsel %vm95, %v63, 0
    %v100 = vsel %vm95, %v64, 0
    %v103 = vsel %vm95, %v65, 0
    %v106 = vsel %vm95, %v66, 0
    %v109 = vsel %vm95, %v67, 0
    %v112 = vsel %vm95, %v68, 0
    %v115 = vsel %vm95, %v69, 0
    %v118 = vsel %vm95, %v70, 0
    %v121 = vsel %vm95, %v71, 0
    %v124 = vsel %vm95, %v72, 0
    %v127 = vsel %vm95, %v73, 0
    %v130 = vsel %vm95, %v74, 0
    %v133 = vsel %vm95, %v75, 0
    %v136 = vsel %vm95, %v76, 0
    %v139 = vsel %vm95, %v77, 0
    %v142 = vsel %vm95, %v78, 0
    %144 = vmatpush.msra.mxu0 0.0
    %145 = vmatpush.msra.mxu0 0.0
    %146 = vmatpush.msra.mxu0 0.0
    %147 = vmatpush.msra.mxu0 0.0
    %148 = vmatpush.msra.mxu0 0.0
    %149 = vmatpush.msra.mxu0 0.0
    %150 = vmatpush.msra.mxu0 0.0
    %151 = vmatpush.msra.mxu0 0.0
    %152 = vmatpush.msra.mxu0 0.0
    %153 = vmatpush.msra.mxu0 0.0
    %154 = vmatpush.msra.mxu0 0.0
    %155 = vmatpush.msra.mxu0 0.0
    %156 = vmatpush.msra.mxu0 0.0
    %157 = vmatpush.msra.mxu0 0.0
    %158 = vmatpush.msra.mxu0 0.0
    %159 = vmatpush.msra.mxu0 %v62
    %160 = vmatmul.f32.gmra.mxu0 %v97
    %v161 = vpop.f32.mrf.mxu0
    %v162 = vadd.f32 %v79, %v161
    %163 = vmatmul.f32.gmra.mxu0 %v100
    %v164 = vpop.f32.mrf.mxu0
    %v165 = vadd.f32 %v80, %v164
    %166 = vmatmul.f32.gmra.mxu0 %v103
    %v167 = vpop.f32.mrf.mxu0
    %v168 = vadd.f32 %v81, %v167
    %169 = vmatmul.f32.gmra.mxu0 %v106
    %v170 = vpop.f32.mrf.mxu0
    %v171 = vadd.f32 %v82, %v170
    %172 = vmatmul.f32.gmra.mxu0 %v109
    %v173 = vpop.f32.mrf.mxu0
    %v174 = vadd.f32 %v83, %v173
    %175 = vmatmul.f32.gmra.mxu0 %v112
    %v176 = vpop.f32.mrf.mxu0
    %v177 = vadd.f32 %v84, %v176
    %178 = vmatmul.f32.gmra.mxu0 %v115
    %v179 = vpop.f32.mrf.mxu0
    %v180 = vadd.f32 %v85, %v179
    %181 = vmatmul.f32.gmra.mxu0 %v118
    %v182 = vpop.f32.mrf.mxu0
    %v183 = vadd.f32 %v86, %v182
    %184 = vmatmul.f32.gmra.mxu0 %v121
    %v185 = vpop.f32.mrf.mxu0
    %v186 = vadd.f32 %v87, %v185
    %187 = vmatmul.f32.gmra.mxu0 %v124
    %v188 = vpop.f32.mrf.mxu0
    %v189 = vadd.f32 %v88, %v188
    %190 = vmatmul.f32.gmra.mxu0 %v127
    %v191 = vpop.f32.mrf.mxu0
    %v192 = vadd.f32 %v89, %v191
    %193 = vmatmul.f32.gmra.mxu0 %v130
    %v194 = vpop.f32.mrf.mxu0
    %v195 = vadd.f32 %v90, %v194
    %196 = vmatmul.f32.gmra.mxu0 %v133
    %v197 = vpop.f32.mrf.mxu0
    %v198 = vadd.f32 %v91, %v197
    %199 = vmatmul.f32.gmra.mxu0 %v136
    %v200 = vpop.f32.mrf.mxu0
    %v201 = vadd.f32 %v92, %v200
    %202 = vmatmul.f32.gmra.mxu0 %v139
    %v203 = vpop.f32.mrf.mxu0
    %v204 = vadd.f32 %v93, %v203
    %205 = vmatmul.f32.gmra.mxu0 %v142
    %v206 = vpop.f32.mrf.mxu0
    %v207 = vadd.f32 %v94, %v206
    %208 = vdwg.mxu0
    %v209 = vmax.f32 %v162, 0.0
    %v210 = vmax.f32 %v165, 0.0
    %v211 = vmax.f32 %v168, 0.0
    %v212 = vmax.f32 %v171, 0.0
    %v213 = vmax.f32 %v174, 0.0
    %v214 = vmax.f32 %v177, 0.0
    %v215 = vmax.f32 %v180, 0.0
    %v216 = vmax.f32 %v183, 0.0
    %v217 = vmax.f32 %v186, 0.0
    %v218 = vmax.f32 %v189, 0.0
    %v219 = vmax.f32 %v192, 0.0
    %v220 = vmax.f32 %v195, 0.0
    %v221 = vmax.f32 %v198, 0.0
    %v222 = vmax.f32 %v201, 0.0
    %v223 = vmax.f32 %v204, 0.0
    %v224 = vmax.f32 %v207, 0.0
    %v225 = vld [vmem:[%s2] sm:$0xff]
    %v226 = vld [vmem:[%s3] sm:$0xff]
    %227 = vmatpush.msra.mxu0 %v224
    %228 = vmatpush.msra.mxu0 %v223
    %229 = vmatpush.msra.mxu0 %v222
    %230 = vmatpush.msra.mxu0 %v221
    %231 = vmatpush.msra.mxu0 %v220
    %232 = vmatpush.msra.mxu0 %v219
    %233 = vmatpush.msra.mxu0 %v218
    %234 = vmatpush.msra.mxu0 %v217
    %235 = vmatpush.msra.mxu0 %v216
    %236 = vmatpush.msra.mxu0 %v215
    %237 = vmatpush.msra.mxu0 %v214
    %238 = vmatpush.msra.mxu0 %v213
    %239 = vmatpush.msra.mxu0 %v212
    %240 = vmatpush.msra.mxu0 %v211
    %241 = vmatpush.msra.mxu0 %v210
    %242 = vmatpush.msra.mxu0 %v209
    %243 = vmatmul.f32.gmra.mxu0 %v225
    %v244 = vpop.f32.mrf.mxu0
    %v245 = vadd.f32 %v226, %v244
    %246 = vdwg.mxu0
    %v247 = vxor.u32 %v245, 2147483648
    %v248 = vmul.f32 %v247, 1.442695
    %v249 = vpow.pop %v248
    %v250 = vadd.f32 %v249, 1.0
    %v251 = vrcp.pop %v250
    %v252 = vmul.f32 %v250, %v251
    %v253 = vsub.f32 1.0, %v252
    %v254 = vmul.f32 %v251, %v253
    %v255 = vadd.f32 %v251, %v254
    %vm256 = vweird.f32 %v250
    %vm257 = vweird.f32 %v251
    %vm258 = vmor %vm256, %vm257
    %v259 = vsel %vm258, %v251, %v255
    %v260 = vand.u32 2147483647, %v250
    %vm261 = vcmp.eq.f32.partialorder %v260, 8.507059e+37
    %v262 = vand.u32 %v250, 2147483648
    %v263 = vor.u32 1.1754944e-38, %v262
    %v264 = vsel %vm261, %v263, %v259
    %v265 = vmul.f32 1.0, %v264
    %267 = vset.pattern.permute.xlu0 0
    %268 = vperm.xlu0 %267, %v265
    %v269 = vpop.permute.xlu0 %268
    %v271 = vmul.f32 %v24, %v269
    %v272 = vmul.f32 %v25, %v269
    %273 = vst [vmem:[#allocation2] sm:$0xff] %v271
    %274 = vst [vmem:[#allocation2 + $0x8] sm:$0xff] %v272
    // Predicated region
    $region26: #{tpu_custom_call.1} parent=1 // pred_check
      _
    $region27: #{tpu_custom_call.1} parent=1 // pred_check_branch
      %276 = sbr.rel (0) target = $region29
    $region28: #{tpu_custom_call.1} parent=1 // pred_region
      %278 = vsyncadd [#allocation3], 0
      %s280 = sshll.u32 [#allocation2], 4
      %s281 = int_to_ptr.vmem [resolvable:$true] %s280
      %s282 = sshll.u32 %s6, 4
      %s283 = int_to_ptr.hbm [resolvable:$true] %s282
      %285 = dma.vmem_to_hbm [thread:$0]  %s281, 256, %s283, [#allocation3]
    $region29: #{tpu_custom_call.1} parent=1 // pred_fallthru
      _
    // Predicated region
    $region30: #{tpu_custom_call.1} parent=1 // pred_check
      _
    $region31: #{tpu_custom_call.1} parent=1 // pred_check_branch
      %287 = sbr.rel (0) target = $region33
    $region32: #{tpu_custom_call.1} parent=1 // pred_region
      %289 = dma.done [#allocation3], 256
    $region33: #{tpu_custom_call.1} parent=1 // pred_fallthru
      _
    %290 = vsyncpa [#allocation3], 1

</llo_original>
